<compile_context>
chip_gen: v7x
topology: tpu7x:2x2x1
jax: 0.10.0
libtpu: 0.0.40
codegen_flags: <defaults>
</compile_context>

<pallas_src>
import math
import functools

import numpy as np
import jax
import jax.numpy as jnp
from jax.experimental import pallas as pl
from jax.experimental.pallas import tpu as pltpu

FEATURE_DIM = 4
LOSS_WEIGHT = 1.0
DELTA_V = 0.5
DELTA_D = 1.5
WEIGHTS = (1.0, 1.0)
M_PAD = 8            # max number of unique labels (incl. background 0) per image
OUT_SUBLANES = 8     # packed per-image output block: (8, 128)
OUT_LANES = 128
MAX_TILE_N = 4096    # lanes per N-tile: a few hundred KB of VMEM, fits every chip's scoped limit


# ----------------------------------------------------------------------------- #
# generate_coef: host side (np.argwhere / unique => data-dependent shapes)
# ----------------------------------------------------------------------------- #
def generate_coef_np(instance_2d):
    # TODO(synk): the reference calls generate_coef on the *flattened* instance and then
    # indexes .size(1) of a 1-D tensor (a bug); we use the 2-D masked instance map, the
    # only self-consistent interpretation.
    H, W = instance_2d.shape
    diagonal_scale = math.sqrt(H ** 2 + W ** 2)
    unique_labels = np.unique(instance_2d)
    num_instance = unique_labels.shape[0]
    if num_instance <= 1:
        return None
    pos_id = np.zeros((num_instance, 4))
    for i, lb in enumerate(unique_labels):
        if lb == 0:
            continue
        tmp = np.argwhere(instance_2d == lb)
        pos_id[i, 0] = tmp[0, 0]
        pos_id[i, 1] = tmp[1, 0]
        pos_id[i, 2] = tmp[0, -1]
        pos_id[i, 3] = tmp[1, -1]
    coef = np.zeros((num_instance, num_instance), dtype=np.float32)
    for i, lb in enumerate(unique_labels):
        if lb == 0:
            continue
        for j, _tb in enumerate(unique_labels):
            if j < i:
                continue
            elif j == i:
                coef[i, j] = math.exp(
                    math.sqrt((pos_id[i, 0] - pos_id[i, 2]) ** 2
                              + (pos_id[i, 1] - pos_id[i, 3]) ** 2)
                    / diagonal_scale / 2)
            else:
                coef[i, j] = 1 - 20 * math.exp(
                    -4 - 2.5 * math.sqrt(
                        (pos_id[i, 0] + pos_id[i, 2] - pos_id[j, 0] - pos_id[j, 2]) ** 2
                        + (pos_id[i, 1] + pos_id[i, 3] - pos_id[j, 1] - pos_id[j, 3]) ** 2)
                    / diagonal_scale)
                coef[j, i] = coef[i, j]
    return coef


def _remap_coef(coef, inst_labels, k_labels):
    """Re-index the generate_coef matrix (built from unique(instance)) onto the
    unique(instance_kernel) enumeration used everywhere else. Identity when the two
    label sets coincide (the reference's implicit assumption)."""
    m = len(k_labels)
    out = np.zeros((m, m), np.float32)
    if coef is None:
        return out
    idx = np.full((m,), -1, np.int64)
    for i, lb in enumerate(k_labels):
        w = np.nonzero(inst_labels == lb)[0]
        if w.size:
            idx[i] = w[0]
    for i in range(m):
        if idx[i] < 0:
            continue
        for j in range(m):
            if idx[j] >= 0:
                out[i, j] = coef[idx[i], idx[j]]
    return out


# ----------------------------------------------------------------------------- #
# Pallas kernel: two-pass (mean, then per-pixel aggregation term) over N-tiles
# ----------------------------------------------------------------------------- #
def _sa_kernel(emb_ref, ids_ref, labels_ref, coefd_ref, out_ref, stat_sc, agg_sc):
    p = pl.program_id(1)                 # 0: per-instance mean, 1: aggregation stats
    n = pl.program_id(2)                 # N-tile index
    last_n = pl.num_programs(2) - 1

    labels = labels_ref[...]             # (M_PAD, 1) int32 unique instk labels (0-padded)
    ids = ids_ref[...]                   # (1, T) int32: (instk << 16) | inst
    emb = emb_ref[...]                   # (F, T) f32
    ones_row = jnp.ones((1, emb.shape[1]), jnp.float32)
    dims_abT = (((1,), (1,)), ((), ()))  # contract lane dims of both operands (A.B^T on MXU)

    # ------------- pass 0: per-instance kernel-pixel sums & counts -> mean -------------
    @pl.when(p == 0)
    def _pass0():
        @pl.when(n == 0)
        def _init():
            stat_sc[...] = jnp.zeros_like(stat_sc)

        instk = ids >> 16                                                   # (1, T)
        onehot_k = (labels == instk).astype(jnp.float32)                    # (M, T)
        stat_sc[0:FEATURE_DIM, :] += jax.lax.dot_general(                   # (F, M) sums
            emb, onehot_k, dims_abT, preferred_element_type=jnp.float32)
        stat_sc[FEATURE_DIM:FEATURE_DIM + 1, :] += jax.lax.dot_general(     # (1, M) counts
            ones_row, onehot_k, dims_abT, preferred_element_type=jnp.float32)

        @pl.when(n == last_n)
        def _finalize_mean():
            sum_k = stat_sc[0:FEATURE_DIM, :]
            cnt_k = stat_sc[FEATURE_DIM:FEATURE_DIM + 1, :]
            stat_sc[0:FEATURE_DIM, :] = sum_k / jnp.maximum(cnt_k, 1.0)     # per-instance mean
            stat_sc[FEATURE_DIM:FEATURE_DIM + 1, :] = coefd_ref[...]        # row F <- coef[i, i]

    # ------------- pass 1: per-pixel aggregation term, reduced per instance -------------
    @pl.when(p == 1)
    def _pass1():
        @pl.when(n == 0)
        def _init():
            agg_sc[...] = jnp.zeros_like(agg_sc)

        inst = ids & 0xFFFF                                                 # (1, T)
        onehot_i = (labels == inst).astype(jnp.float32)                     # (M, T)

        # gather each pixel's own instance mean (rows 0..F-1) and coef_ii (row F)
        gathered = jax.lax.dot_general(                                     # (F+1, T)
            stat_sc[...], onehot_i, (((1,), (0,)), ((), ())),
            preferred_element_type=jnp.float32)
        mean_px = gathered[0:FEATURE_DIM, :]                                # (F, T)
        coef_px = gathered[FEATURE_DIM:FEATURE_DIM + 1, :]                  # (1, T)

        diff = emb - mean_px
        dist = jnp.sqrt(jnp.sum(diff * diff, axis=0, keepdims=True))        # (1, T)
        v = jnp.maximum(coef_px * dist - DELTA_V, 0.0)
        v = jnp.log(v * v + 1.0)                                            # (1, T)

        agg_sc[0:1, :] += jax.lax.dot_general(                              # sum of log terms
            v, onehot_i, dims_abT, preferred_element_type=jnp.float32)
        agg_sc[1:2, :] += jax.lax.dot_general(                              # pixel counts
            ones_row, onehot_i, dims_abT, preferred_element_type=jnp.float32)

        @pl.when(n == last_n)
        def _emit():
            out_ref[...] = jnp.zeros_like(out_ref)
            out_ref[0:FEATURE_DIM, 0:M_PAD] = stat_sc[0:FEATURE_DIM, :]
            out_ref[FEATURE_DIM:FEATURE_DIM + 2, 0:M_PAD] = agg_sc[...]


@functools.partial(jax.jit, static_argnames=("tile_n",))
def _sa_stats_batched(emb, ids, labels_col, coefd_row, *, tile_n):
    B, F, n_pad = emb.shape
    assert F == FEATURE_DIM and n_pad % tile_n == 0
    grid = (B, 2, n_pad // tile_n)
    return pl.pallas_call(
        _sa_kernel,
        out_shape=jax.ShapeDtypeStruct((B * OUT_SUBLANES, OUT_LANES), jnp.float32),
        grid=grid,
        in_specs=[
            pl.BlockSpec((None, F, tile_n), lambda b, p, n: (b, 0, n)),      # emb (F, T)
            pl.BlockSpec((None, 1, tile_n), lambda b, p, n: (b, 0, n)),      # packed ids (1, T)
            pl.BlockSpec((M_PAD, 1), lambda b, p, n: (b, 0)),                # labels (M, 1)
            pl.BlockSpec((None, 1, M_PAD), lambda b, p, n: (b, 0, 0)),       # coef_ii (1, M)
        ],
        out_specs=pl.BlockSpec((OUT_SUBLANES, OUT_LANES), lambda b, p, n: (b, 0)),
        scratch_shapes=[
            pltpu.VMEM((FEATURE_DIM + 1, M_PAD), jnp.float32),   # [sum|mean ; cnt|coef_ii]
            pltpu.VMEM((2, M_PAD), jnp.float32),                 # [agg_sum ; agg_cnt]
        ],
        compiler_params=pltpu.CompilerParams(
            dimension_semantics=("parallel", "arbitrary", "arbitrary")),
    )(emb, ids, labels_col, coefd_row)


# ----------------------------------------------------------------------------- #
# Host-side forward (glue: thresholding, unique labels, tiny M x M tail terms)
# ----------------------------------------------------------------------------- #
def _choose_tile(n):
    n_up = ((max(int(n), 1) + 127) // 128) * 128
    return min(MAX_TILE_N, n_up)


def sa_loss_forward(emb, instance, kernel, training_mask, bboxes, reduce=True):
    emb = np.asarray(emb, np.float32)
    B, F, H, W = emb.shape
    assert F == FEATURE_DIM
    N = H * W
    tile_n = _choose_tile(N)
    n_pad = ((N + tile_n - 1) // tile_n) * tile_n

    emb_flat = np.zeros((B, F, n_pad), np.float32)
    ids_packed = np.zeros((B, 1, n_pad), np.int32)
    labels_col = np.zeros((B * M_PAD, 1), np.int32)
    coefd_row = np.zeros((B, 1, M_PAD), np.float32)
    per_img = []

    for b in range(B):
        tm = (np.asarray(training_mask[b]) > 0.5).astype(np.int32)
        kn = (np.asarray(kernel[b]) > 0.5).astype(np.int32)
        inst2d = np.asarray(instance[b]).astype(np.int32) * tm
        instk2d = inst2d * kn

        assert int(inst2d.max()) < (1 << 15), "instance ids must fit in 15 bits for packing"
        emb_flat[b, :, :N] = emb[b].reshape(F, N)
        ids_packed[b, 0, :N] = (instk2d.reshape(-1) << 16) | inst2d.reshape(-1)

        k_labels = np.unique(instk2d)
        ni = int(k_labels.shape[0])
        if ni <= 1:
            per_img.append(None)               # reference returns 0 for this image
            continue
        assert ni <= M_PAD, f"num_instance={ni} exceeds M_PAD={M_PAD}"

        coef_full = generate_coef_np(inst2d)
        coef_r = _remap_coef(coef_full, np.unique(inst2d), k_labels)        # (ni, ni)

        labels_col[b * M_PAD:b * M_PAD + ni, 0] = k_labels
        diag = np.diag(coef_r).astype(np.float32).copy()
        diag[k_labels == 0] = 0.0
        coefd_row[b, 0, :ni] = diag
        per_img.append((ni, k_labels, coef_r))

    # single device dispatch + single D2H readback for the whole minibatch
    stats = np.asarray(_sa_stats_batched(
        jnp.asarray(emb_flat), jnp.asarray(ids_packed),
        jnp.asarray(labels_col), jnp.asarray(coefd_row),
        tile_n=tile_n)).reshape(B, OUT_SUBLANES, OUT_LANES)

    loss_batch = np.zeros((B,), np.float32)
    for b in range(B):
        info = per_img[b]
        if info is None:
            continue
        ni, k_labels, coef_r = info
        blk = stats[b]
        mean = blk[0:FEATURE_DIM, 0:ni].T.astype(np.float32).copy()         # (ni, F)
        mean[k_labels == 0] = 0.0     # reference leaves the background column zero
        agg_sum = blk[FEATURE_DIM, 0:ni]
        agg_cnt = blk[FEATURE_DIM + 1, 0:ni]

        l_agg_per = np.zeros((ni,), np.float32)
        nz = k_labels != 0
        l_agg_per[nz] = agg_sum[nz] / np.maximum(agg_cnt[nz], 1.0)
        l_agg = float(np.mean(l_agg_per[1:]))

        if ni > 2:
            d = np.linalg.norm(mean[:, None, :] - mean[None, :, :], axis=2)
            vals = np.log(np.maximum(2.0 * DELTA_D - coef_r * d, 0.0) ** 2 + 1.0)
            sel = ~np.eye(ni, dtype=bool)
            sel[0, :] = False
            sel[:, 0] = False
            l_dis = float(np.mean(vals[sel]))
        else:
            l_dis = 0.0

        l_reg = float(np.mean(np.log(np.linalg.norm(mean, axis=1) + 1.0))) * 0.001
        loss_batch[b] = WEIGHTS[0] * l_agg + WEIGHTS[1] * l_dis + l_reg

    loss_batch = LOSS_WEIGHT * loss_batch
    if reduce:
        return float(np.mean(loss_batch))
    return loss_batch


# ----------------------------------------------------------------------------- #
if __name__ == "__main__":
    B, F, H, W = 2, FEATURE_DIM, 16, 16
    key = jax.random.PRNGKey(0)
    emb = np.asarray(jax.random.normal(key, (B, F, H, W), jnp.float32))

    # deterministic synthetic instance / kernel / mask maps (3 instances + background)
    instance = np.zeros((B, H, W), np.int32)
    instance[:, 2:6, 2:6] = 1
    instance[:, 8:12, 3:7] = 2
    instance[:, 4:9, 9:14] = 3
    kernel = np.zeros((B, H, W), np.float32)
    kernel[:, 3:5, 3:5] = 1.0
    kernel[:, 9:11, 4:6] = 1.0
    kernel[:, 5:8, 10:13] = 1.0
    training_mask = np.ones((B, H, W), np.float32)
    bboxes = np.zeros((B, 4), np.float32)

    loss = sa_loss_forward(emb, instance, kernel, training_mask, bboxes, reduce=True)
    jax.block_until_ready(jnp.asarray(loss))
    print("KERNEL_OK")
</pallas_src>

<mosaic_0001>
module attributes {stable_mosaic.version = 11 : i64} {
  func.func @_sa_kernel(%arg0: i32, %arg1: i32, %arg2: i32, %arg3: memref<1x4x256xf32, #tpu.memory_space<vmem>>, %arg4: memref<1x1x256xi32, #tpu.memory_space<vmem>>, %arg5: memref<8x1xi32, #tpu.memory_space<vmem>>, %arg6: memref<1x1x8xf32, #tpu.memory_space<vmem>>, %arg7: memref<8x128xf32, #tpu.memory_space<vmem>>, %arg8: memref<5x8xf32, #tpu.memory_space<vmem>>, %arg9: memref<2x8xf32, #tpu.memory_space<vmem>>) attributes {dimension_semantics = [#tpu.dimension_semantics<parallel>, #tpu.dimension_semantics<arbitrary>, #tpu.dimension_semantics<arbitrary>], iteration_bounds = array<i64: 2, 2, 1>, scalar_prefetch = 0 : i64, scratch_operands = 2 : i64, tpu.core_type = #tpu.core_type<tc>, window_params = [{transform_indices = @transform_0, window_bounds = array<i64: 1, 4, 256>}, {transform_indices = @transform_1, window_bounds = array<i64: 1, 1, 256>}, {transform_indices = @transform_2, window_bounds = array<i64: 8, 1>}, {transform_indices = @transform_3, window_bounds = array<i64: 1, 1, 8>}, {transform_indices = @transform_4, window_bounds = array<i64: 8, 128>}]} {
    %c0 = arith.constant 0 : index
    %c0_0 = arith.constant 0 : index
    %0 = vector.load %arg5[%c0, %c0_0] : memref<8x1xi32, #tpu.memory_space<vmem>>, vector<8x1xi32>
    %c0_1 = arith.constant 0 : index
    %c0_2 = arith.constant 0 : index
    %c0_3 = arith.constant 0 : index
    %1 = vector.load %arg4[%c0_1, %c0_2, %c0_3] : memref<1x1x256xi32, #tpu.memory_space<vmem>>, vector<1x1x256xi32>
    %2 = vector.shape_cast %1 : vector<1x1x256xi32> to vector<1x256xi32>
    %c0_4 = arith.constant 0 : index
    %c0_5 = arith.constant 0 : index
    %c0_6 = arith.constant 0 : index
    %3 = vector.load %arg3[%c0_4, %c0_5, %c0_6] : memref<1x4x256xf32, #tpu.memory_space<vmem>>, vector<1x4x256xf32>
    %4 = vector.shape_cast %3 : vector<1x4x256xf32> to vector<4x256xf32>
    %cst = arith.constant 1.000000e+00 : f32
    %5 = vector.broadcast %cst : f32 to vector<1x256xf32>
    %c0_i32 = arith.constant 0 : i32
    %6 = arith.cmpi eq, %arg1, %c0_i32 : i32
    %7 = arith.extui %6 : i1 to i32
    %c0_i32_7 = arith.constant 0 : i32
    %8 = arith.cmpi ne, %7, %c0_i32_7 : i32
    scf.if %8 {
      %c0_i32_9 = arith.constant 0 : i32
      %12 = arith.cmpi eq, %arg2, %c0_i32_9 : i32
      %13 = arith.extui %12 : i1 to i32
      %c0_i32_10 = arith.constant 0 : i32
      %14 = arith.cmpi ne, %13, %c0_i32_10 : i32
      scf.if %14 {
        %cst_22 = arith.constant 0.000000e+00 : f32
        %33 = vector.broadcast %cst_22 : f32 to vector<5x8xf32>
        %c0_23 = arith.constant 0 : index
        %c0_24 = arith.constant 0 : index
        %34 = vector.load %arg8[%c0_23, %c0_24] : memref<5x8xf32, #tpu.memory_space<vmem>>, vector<5x8xf32>
        tpu.vector_store %arg8[%c0_23, %c0_24], %33 {strides = array<i32>} : memref<5x8xf32, #tpu.memory_space<vmem>>, vector<5x8xf32>,
      } else {
      }
      %c16_i32 = arith.constant 16 : i32
      %15 = vector.broadcast %c16_i32 : i32 to vector<1x256xi32>
      %16 = arith.shrsi %2, %15 : vector<1x256xi32>
      %17 = vector.broadcast %0 : vector<8x1xi32> to vector<8x256xi32>
      %18 = vector.broadcast %16 : vector<1x256xi32> to vector<8x256xi32>
      %19 = arith.cmpi eq, %17, %18 : vector<8x256xi32>
      %20 = arith.extui %19 : vector<8x256xi1> to vector<8x256xi32>
      %21 = arith.sitofp %20 : vector<8x256xi32> to vector<8x256xf32>
      %c0_11 = arith.constant 0 : index
      %c0_12 = arith.constant 0 : index
      %22 = vector.load %arg8[%c0_11, %c0_12] : memref<5x8xf32, #tpu.memory_space<vmem>>, vector<4x8xf32>
      %cst_13 = arith.constant dense<0.000000e+00> : vector<4x8xf32>
      %23 = tpu.matmul %4, %21, %cst_13 {dimension_numbers = #tpu.dot_dimension_numbers<[1], [1], [0], [0], [0, 0, 1, 0], [], []>} : vector<4x256xf32>, vector<8x256xf32>, vector<4x8xf32> -> vector<4x8xf32>
      %24 = arith.addf %22, %23 : vector<4x8xf32>
      %c0_14 = arith.constant 0 : index
      %c0_15 = arith.constant 0 : index
      %25 = vector.load %arg8[%c0_14, %c0_15] : memref<5x8xf32, #tpu.memory_space<vmem>>, vector<4x8xf32>
      tpu.vector_store %arg8[%c0_14, %c0_15], %24 {strides = array<i32>} : memref<5x8xf32, #tpu.memory_space<vmem>>, vector<4x8xf32>,
      %c4 = arith.constant 4 : index
      %c0_16 = arith.constant 0 : index
      %26 = vector.load %arg8[%c4, %c0_16] : memref<5x8xf32, #tpu.memory_space<vmem>>, vector<1x8xf32>
      %cst_17 = arith.constant dense<0.000000e+00> : vector<1x8xf32>
      %27 = tpu.matmul %5, %21, %cst_17 {dimension_numbers = #tpu.dot_dimension_numbers<[1], [1], [0], [0], [0, 0, 1, 0], [], []>} : vector<1x256xf32>, vector<8x256xf32>, vector<1x8xf32> -> vector<1x8xf32>
      %28 = arith.addf %26, %27 : vector<1x8xf32>
      %c4_18 = arith.constant 4 : index
      %c0_19 = arith.constant 0 : index
      %29 = vector.load %arg8[%c4_18, %c0_19] : memref<5x8xf32, #tpu.memory_space<vmem>>, vector<1x8xf32>
      tpu.vector_store %arg8[%c4_18, %c0_19], %28 {strides = array<i32>} : memref<5x8xf32, #tpu.memory_space<vmem>>, vector<1x8xf32>,
      %c0_i32_20 = arith.constant 0 : i32
      %30 = arith.cmpi eq, %arg2, %c0_i32_20 : i32
      %31 = arith.extui %30 : i1 to i32
      %c0_i32_21 = arith.constant 0 : i32
      %32 = arith.cmpi ne, %31, %c0_i32_21 : i32
      scf.if %32 {
        %c0_22 = arith.constant 0 : index
        %c0_23 = arith.constant 0 : index
        %33 = vector.load %arg8[%c0_22, %c0_23] : memref<5x8xf32, #tpu.memory_space<vmem>>, vector<4x8xf32>
        %c4_24 = arith.constant 4 : index
        %c0_25 = arith.constant 0 : index
        %34 = vector.load %arg8[%c4_24, %c0_25] : memref<5x8xf32, #tpu.memory_space<vmem>>, vector<1x8xf32>
        %cst_26 = arith.constant 1.000000e+00 : f32
        %35 = vector.broadcast %cst_26 : f32 to vector<1x8xf32>
        %36 = arith.maximumf %34, %35 : vector<1x8xf32>
        %37 = vector.broadcast %36 : vector<1x8xf32> to vector<4x8xf32>
        %38 = arith.divf %33, %37 : vector<4x8xf32>
        %c0_27 = arith.constant 0 : index
        %c0_28 = arith.constant 0 : index
        %39 = vector.load %arg8[%c0_27, %c0_28] : memref<5x8xf32, #tpu.memory_space<vmem>>, vector<4x8xf32>
        tpu.vector_store %arg8[%c0_27, %c0_28], %38 {strides = array<i32>} : memref<5x8xf32, #tpu.memory_space<vmem>>, vector<4x8xf32>,
        %c0_29 = arith.constant 0 : index
        %c0_30 = arith.constant 0 : index
        %c0_31 = arith.constant 0 : index
        %40 = vector.load %arg6[%c0_29, %c0_30, %c0_31] : memref<1x1x8xf32, #tpu.memory_space<vmem>>, vector<1x1x8xf32>
        %41 = vector.shape_cast %40 : vector<1x1x8xf32> to vector<1x8xf32>
        %c4_32 = arith.constant 4 : index
        %c0_33 = arith.constant 0 : index
        %42 = vector.load %arg8[%c4_32, %c0_33] : memref<5x8xf32, #tpu.memory_space<vmem>>, vector<1x8xf32>
        tpu.vector_store %arg8[%c4_32, %c0_33], %41 {strides = array<i32>} : memref<5x8xf32, #tpu.memory_space<vmem>>, vector<1x8xf32>,
      } else {
      }
    } else {
    }
    %c1_i32 = arith.constant 1 : i32
    %9 = arith.cmpi eq, %arg1, %c1_i32 : i32
    %10 = arith.extui %9 : i1 to i32
    %c0_i32_8 = arith.constant 0 : i32
    %11 = arith.cmpi ne, %10, %c0_i32_8 : i32
    scf.if %11 {
      %c0_i32_9 = arith.constant 0 : i32
      %12 = arith.cmpi eq, %arg2, %c0_i32_9 : i32
      %13 = arith.extui %12 : i1 to i32
      %c0_i32_10 = arith.constant 0 : i32
      %14 = arith.cmpi ne, %13, %c0_i32_10 : i32
      scf.if %14 {
        %cst_29 = arith.constant 0.000000e+00 : f32
        %51 = vector.broadcast %cst_29 : f32 to vector<2x8xf32>
        %c0_30 = arith.constant 0 : index
        %c0_31 = arith.constant 0 : index
        %52 = vector.load %arg9[%c0_30, %c0_31] : memref<2x8xf32, #tpu.memory_space<vmem>>, vector<2x8xf32>
        tpu.vector_store %arg9[%c0_30, %c0_31], %51 {strides = array<i32>} : memref<2x8xf32, #tpu.memory_space<vmem>>, vector<2x8xf32>,
      } else {
      }
      %c65535_i32 = arith.constant 65535 : i32
      %15 = vector.broadcast %c65535_i32 : i32 to vector<1x256xi32>
      %16 = arith.andi %2, %15 : vector<1x256xi32>
      %17 = vector.broadcast %0 : vector<8x1xi32> to vector<8x256xi32>
      %18 = vector.broadcast %16 : vector<1x256xi32> to vector<8x256xi32>
      %19 = arith.cmpi eq, %17, %18 : vector<8x256xi32>
      %20 = arith.extui %19 : vector<8x256xi1> to vector<8x256xi32>
      %21 = arith.sitofp %20 : vector<8x256xi32> to vector<8x256xf32>
      %c0_11 = arith.constant 0 : index
      %c0_12 = arith.constant 0 : index
      %22 = vector.load %arg8[%c0_11, %c0_12] : memref<5x8xf32, #tpu.memory_space<vmem>>, vector<5x8xf32>
      %cst_13 = arith.constant dense<0.000000e+00> : vector<5x256xf32>
      %23 = tpu.matmul %22, %21, %cst_13 {dimension_numbers = #tpu.dot_dimension_numbers<[1], [0], [0], [1], [0, 0, 1, 1], [], []>} : vector<5x8xf32>, vector<8x256xf32>, vector<5x256xf32> -> vector<5x256xf32>
      %24 = vector.extract_strided_slice %23 {offsets = [0, 0], sizes = [4, 256], strides = [1, 1]} : vector<5x256xf32> to vector<4x256xf32>
      %25 = vector.extract_strided_slice %23 {offsets = [4, 0], sizes = [1, 256], strides = [1, 1]} : vector<5x256xf32> to vector<1x256xf32>
      %26 = arith.subf %4, %24 : vector<4x256xf32>
      %27 = arith.mulf %26, %26 : vector<4x256xf32>
      %cst_14 = arith.constant dense<0.000000e+00> : vector<256xf32>
      %28 = vector.multi_reduction <add>, %27, %cst_14 [0] : vector<4x256xf32> to vector<256xf32>
      %29 = vector.shape_cast %28 : vector<256xf32> to vector<1x256xf32>
      %30 = math.sqrt %29 : vector<1x256xf32>
      %31 = arith.mulf %25, %30 : vector<1x256xf32>
      %cst_15 = arith.constant 5.000000e-01 : f32
      %32 = vector.broadcast %cst_15 : f32 to vector<1x256xf32>
      %33 = arith.subf %31, %32 : vector<1x256xf32>
      %cst_16 = arith.constant 0.000000e+00 : f32
      %34 = vector.broadcast %cst_16 : f32 to vector<1x256xf32>
      %35 = arith.maximumf %33, %34 : vector<1x256xf32>
      %36 = arith.mulf %35, %35 : vector<1x256xf32>
      %cst_17 = arith.constant 1.000000e+00 : f32
      %37 = vector.broadcast %cst_17 : f32 to vector<1x256xf32>
      %38 = arith.addf %36, %37 : vector<1x256xf32>
      %39 = math.log %38 : vector<1x256xf32>
      %c0_18 = arith.constant 0 : index
      %c0_19 = arith.constant 0 : index
      %40 = vector.load %arg9[%c0_18, %c0_19] : memref<2x8xf32, #tpu.memory_space<vmem>>, vector<1x8xf32>
      %cst_20 = arith.constant dense<0.000000e+00> : vector<1x8xf32>
      %41 = tpu.matmul %39, %21, %cst_20 {dimension_numbers = #tpu.dot_dimension_numbers<[1], [1], [0], [0], [0, 0, 1, 0], [], []>} : vector<1x256xf32>, vector<8x256xf32>, vector<1x8xf32> -> vector<1x8xf32>
      %42 = arith.addf %40, %41 : vector<1x8xf32>
      %c0_21 = arith.constant 0 : index
      %c0_22 = arith.constant 0 : index
      %43 = vector.load %arg9[%c0_21, %c0_22] : memref<2x8xf32, #tpu.memory_space<vmem>>, vector<1x8xf32>
      tpu.vector_store %arg9[%c0_21, %c0_22], %42 {strides = array<i32>} : memref<2x8xf32, #tpu.memory_space<vmem>>, vector<1x8xf32>,
      %c1 = arith.constant 1 : index
      %c0_23 = arith.constant 0 : index
      %44 = vector.load %arg9[%c1, %c0_23] : memref<2x8xf32, #tpu.memory_space<vmem>>, vector<1x8xf32>
      %cst_24 = arith.constant dense<0.000000e+00> : vector<1x8xf32>
      %45 = tpu.matmul %5, %21, %cst_24 {dimension_numbers = #tpu.dot_dimension_numbers<[1], [1], [0], [0], [0, 0, 1, 0], [], []>} : vector<1x256xf32>, vector<8x256xf32>, vector<1x8xf32> -> vector<1x8xf32>
      %46 = arith.addf %44, %45 : vector<1x8xf32>
      %c1_25 = arith.constant 1 : index
      %c0_26 = arith.constant 0 : index
      %47 = vector.load %arg9[%c1_25, %c0_26] : memref<2x8xf32, #tpu.memory_space<vmem>>, vector<1x8xf32>
      tpu.vector_store %arg9[%c1_25, %c0_26], %46 {strides = array<i32>} : memref<2x8xf32, #tpu.memory_space<vmem>>, vector<1x8xf32>,
      %c0_i32_27 = arith.constant 0 : i32
      %48 = arith.cmpi eq, %arg2, %c0_i32_27 : i32
      %49 = arith.extui %48 : i1 to i32
      %c0_i32_28 = arith.constant 0 : i32
      %50 = arith.cmpi ne, %49, %c0_i32_28 : i32
      scf.if %50 {
        %cst_29 = arith.constant 0.000000e+00 : f32
        %51 = vector.broadcast %cst_29 : f32 to vector<8x128xf32>
        %c0_30 = arith.constant 0 : index
        %c0_31 = arith.constant 0 : index
        %52 = vector.load %arg7[%c0_30, %c0_31] : memref<8x128xf32, #tpu.memory_space<vmem>>, vector<8x128xf32>
        tpu.vector_store %arg7[%c0_30, %c0_31], %51 {strides = array<i32>} : memref<8x128xf32, #tpu.memory_space<vmem>>, vector<8x128xf32>,
        %c0_32 = arith.constant 0 : index
        %c0_33 = arith.constant 0 : index
        %53 = vector.load %arg8[%c0_32, %c0_33] : memref<5x8xf32, #tpu.memory_space<vmem>>, vector<4x8xf32>
        %c0_34 = arith.constant 0 : index
        %c0_35 = arith.constant 0 : index
        %54 = vector.load %arg7[%c0_34, %c0_35] : memref<8x128xf32, #tpu.memory_space<vmem>>, vector<4x8xf32>
        tpu.vector_store %arg7[%c0_34, %c0_35], %53 {strides = array<i32>} : memref<8x128xf32, #tpu.memory_space<vmem>>, vector<4x8xf32>,
        %c0_36 = arith.constant 0 : index
        %c0_37 = arith.constant 0 : index
        %55 = vector.load %arg9[%c0_36, %c0_37] : memref<2x8xf32, #tpu.memory_space<vmem>>, vector<2x8xf32>
        %c4 = arith.constant 4 : index
        %c0_38 = arith.constant 0 : index
        %56 = vector.load %arg7[%c4, %c0_38] : memref<8x128xf32, #tpu.memory_space<vmem>>, vector<2x8xf32>
        tpu.vector_store %arg7[%c4, %c0_38], %55 {strides = array<i32>} : memref<8x128xf32, #tpu.memory_space<vmem>>, vector<2x8xf32>,
      } else {
      }
    } else {
    }
    return
  }
  func.func @transform_0(%arg0: i32, %arg1: i32, %arg2: i32) -> (i32, i32, i32) {
    %c0_i32 = arith.constant 0 : i32
    %c0_i32_0 = arith.constant 0 : i32
    return %arg0, %c0_i32, %arg2 : i32, i32, i32
  }
  func.func @transform_1(%arg0: i32, %arg1: i32, %arg2: i32) -> (i32, i32, i32) {
    %c0_i32 = arith.constant 0 : i32
    %c0_i32_0 = arith.constant 0 : i32
    return %arg0, %c0_i32, %arg2 : i32, i32, i32
  }
  func.func @transform_2(%arg0: i32, %arg1: i32, %arg2: i32) -> (i32, i32) {
    %c0_i32 = arith.constant 0 : i32
    %c0_i32_0 = arith.constant 0 : i32
    return %arg0, %c0_i32 : i32, i32
  }
  func.func @transform_3(%arg0: i32, %arg1: i32, %arg2: i32) -> (i32, i32, i32) {
    %c0_i32 = arith.constant 0 : i32
    %c0_i32_0 = arith.constant 0 : i32
    %c0_i32_1 = arith.constant 0 : i32
    return %arg0, %c0_i32, %c0_i32_0 : i32, i32, i32
  }
  func.func @transform_4(%arg0: i32, %arg1: i32, %arg2: i32) -> (i32, i32) {
    %c0_i32 = arith.constant 0 : i32
    %c0_i32_0 = arith.constant 0 : i32
    return %arg0, %c0_i32 : i32, i32
  }
}

</mosaic_0001>

<llo_original>
// kernel: _sa_stats_batched.1
$region0: #{_sa_stats_batched.1}
  #allocation0 [shape = 'u32[]', space=smem, size = 0x4, offset = 0x4, fixed_abs, tag = 'smem constant byte address 0x4 - core index']
  #allocation1 [shape = 'u32[144,128]{1,0:T(1,128)}', space=vmem, size = 0x12000, scoped, tag = 'internal scratch']
  #allocation2 [shape = 'f32[5,8]{1,0:T(8,128)}', space=vmem, size = 0x1000, scoped, tag = 'scratch operand']
  #allocation3 [shape = 'f32[2,8]{1,0:T(2,128)}', space=vmem, size = 0x400, scoped, tag = 'scratch operand']
  %s0 = inlined_call_operand.vmem [shape: f32[2,4,256], index: 0, kind: input, shape index: {}]
  %s1 = inlined_call_operand.vmem [shape: s32[2,1,256], index: 1, kind: input, shape index: {}]
  %s2 = inlined_call_operand.vmem [shape: s32[16,1], index: 2, kind: input, shape index: {}]
  %s3 = inlined_call_operand.vmem [shape: f32[2,1,8], index: 3, kind: input, shape index: {}]
  %s4 = inlined_call_operand.hbm [shape: f32[16,128], index: 4, kind: output, shape index: {}]
  %s5 = sld [smem:[#allocation0]]
  $region73: #{_sa_stats_batched.1} parent=0
    _
  %s7 = ssub.s32 1, %s5
  %s8 = scalar_select 0, %s7, %s5
  $region1: #{_sa_stats_batched.1} parent=0
    #allocation4 [shape = 'u8[8192]{0}', space=vmem, size = 0x2000, scoped, tag = 'output window, operand 0']
    #allocation5 [shape = 's32[2]{0}', space=sflag, size = 0x8, scoped, tag = 'scoped memory for _sa_stats_batched.1']
    %9 = vsyncpa [#allocation5], 0
    %s10 = scalar_lea.sflag [#allocation5], 1
    %11 = vsyncpa %s10, 0
    loop: start=0, step=1, limit=6
    $region2: #{_sa_stats_batched.1} parent=1 // loop_pre_header
      _
    $region3: #{_sa_stats_batched.1} parent=1 // loop_header
      %s13 = sphi 0, %s17
      %p14 = scmp.ge.s32.totalorder %s13, 6
      %s20 = sphi 0, %s39
      %s21 = sphi 0, %s35
      %s22 = sphi 0, %s31
      %s23 = sphi 0, %s20
      %s24 = sphi 0, %s21
      %s25 = sphi 0, %s22
      %s26 = sphi 0, %s23
      %s27 = sphi 0, %s24
      %s28 = sphi 0, %s25
      %s44 = sphi 0, %s46
      %s47 = sphi 0, %s44
      %s48 = sphi 0, %s47
      %s64 = sphi 0, %s48
      %s72 = sphi 0, %s74
      %s75 = sphi 0, %s72
      %s76 = sphi 0, %s75
      %s92 = sphi 0, %s76
      %s98 = sphi 0, %s100
      %s101 = sphi 0, %s98
      %s102 = sphi 0, %s101
      %s118 = sphi 0, %s102
      %s124 = sphi 0, %s126
      %s127 = sphi 0, %s124
      %s128 = sphi 0, %s127
      %s144 = sphi 0, %s128
      %s150 = sphi 0, %s152
      %s153 = sphi 0, %s150
      %s154 = sphi 0, %s153
      %s170 = sphi 0, %s154
    $region4: #{_sa_stats_batched.1} parent=1 // loop_header_branch
      %16 = sbr.rel (%p14) target = $region8
    $region5: #{_sa_stats_batched.1} parent=1 // loop_body
      %s18 = ssub.s32 %s13, 1
      %s19 = ssub.s32 %s13, 2
      %s29 = sadd.s32 1, %s22
      %p30 = scmp.ge.s32.totalorder %s29, 1
      %s31 = scalar_select %p30, 0, %s29
      %s32 = sadd.s32 1, %s21
      %s33 = scalar_select %p30, %s32, %s21
      %p34 = scmp.ge.s32.totalorder %s33, 2
      %s35 = scalar_select %p34, 0, %s33
      %s36 = sadd.s32 1, %s20
      %s37 = scalar_select %p34, %s36, %s20
      %p38 = scmp.ge.s32.totalorder %s37, 2
      %s39 = scalar_select %p38, 0, %s37
      %s40 = ssub.s32 %s20, %s39
      %s41 = ssub.s32 %s22, %s31
      %s42 = sor.u32 %s40, %s41
      %p43 = scmp.eq.s32.totalorder %s42, 0
      %s45 = sadd.s32 %s44, 1
      %s46 = scalar_select %p43, %s44, %s45
      %p49 = pneg %p43
      %p50 = scmp.eq.s32.totalorder %s13, 3
      %p51 = por %p49, %p50
      %p52 = scmp.ne.s32.totalorder %s44, %s47
      %p53 = scmp.eq.s32.totalorder %s13, 0
      %p54 = por %p52, %p53
      %p55 = scmp.ne.s32.totalorder %s44, %s47
      %p56 = scmp.eq.s32.totalorder %s18, 3
      %p57 = por %p55, %p56
      %p58 = scmp.ne.s32.totalorder %s47, %s48
      %p59 = scmp.eq.s32.totalorder %s18, 0
      %p60 = por %p58, %p59
      %p61 = scmp.ne.s32.totalorder %s47, %s48
      %p62 = scmp.eq.s32.totalorder %s19, 3
      %p63 = por %p61, %p62
      %p65 = scmp.ne.s32.totalorder %s48, %s64
      %p66 = scmp.eq.s32.totalorder %s19, 0
      %p67 = por %p65, %p66
      %s68 = ssub.s32 %s20, %s39
      %s69 = ssub.s32 %s22, %s31
      %s70 = sor.u32 %s68, %s69
      %p71 = scmp.eq.s32.totalorder %s70, 0
      %s73 = sadd.s32 %s72, 1
      %s74 = scalar_select %p71, %s72, %s73
      %p77 = pneg %p71
      %p78 = scmp.eq.s32.totalorder %s13, 3
      %p79 = por %p77, %p78
      %p80 = scmp.ne.s32.totalorder %s72, %s75
      %p81 = scmp.eq.s32.totalorder %s13, 0
      %p82 = por %p80, %p81
      %p83 = scmp.ne.s32.totalorder %s72, %s75
      %p84 = scmp.eq.s32.totalorder %s18, 3
      %p85 = por %p83, %p84
      %p86 = scmp.ne.s32.totalorder %s75, %s76
      %p87 = scmp.eq.s32.totalorder %s18, 0
      %p88 = por %p86, %p87
      %p89 = scmp.ne.s32.totalorder %s75, %s76
      %p90 = scmp.eq.s32.totalorder %s19, 3
      %p91 = por %p89, %p90
      %p93 = scmp.ne.s32.totalorder %s76, %s92
      %p94 = scmp.eq.s32.totalorder %s19, 0
      %p95 = por %p93, %p94
      %s96 = ssub.s32 %s20, %s39
      %p97 = scmp.eq.s32.totalorder %s96, 0
      %s99 = sadd.s32 %s98, 1
      %s100 = scalar_select %p97, %s98, %s99
      %p103 = pneg %p97
      %p104 = scmp.eq.s32.totalorder %s13, 3
      %p105 = por %p103, %p104
      %p106 = scmp.ne.s32.totalorder %s98, %s101
      %p107 = scmp.eq.s32.totalorder %s13, 0
      %p108 = por %p106, %p107
      %p109 = scmp.ne.s32.totalorder %s98, %s101
      %p110 = scmp.eq.s32.totalorder %s18, 3
      %p111 = por %p109, %p110
      %p112 = scmp.ne.s32.totalorder %s101, %s102
      %p113 = scmp.eq.s32.totalorder %s18, 0
      %p114 = por %p112, %p113
      %p115 = scmp.ne.s32.totalorder %s101, %s102
      %p116 = scmp.eq.s32.totalorder %s19, 3
      %p117 = por %p115, %p116
      %p119 = scmp.ne.s32.totalorder %s102, %s118
      %p120 = scmp.eq.s32.totalorder %s19, 0
      %p121 = por %p119, %p120
      %s122 = ssub.s32 %s20, %s39
      %p123 = scmp.eq.s32.totalorder %s122, 0
      %s125 = sadd.s32 %s124, 1
      %s126 = scalar_select %p123, %s124, %s125
      %p129 = pneg %p123
      %p130 = scmp.eq.s32.totalorder %s13, 3
      %p131 = por %p129, %p130
      %p132 = scmp.ne.s32.totalorder %s124, %s127
      %p133 = scmp.eq.s32.totalorder %s13, 0
      %p134 = por %p132, %p133
      %p135 = scmp.ne.s32.totalorder %s124, %s127
      %p136 = scmp.eq.s32.totalorder %s18, 3
      %p137 = por %p135, %p136
      %p138 = scmp.ne.s32.totalorder %s127, %s128
      %p139 = scmp.eq.s32.totalorder %s18, 0
      %p140 = por %p138, %p139
      %p141 = scmp.ne.s32.totalorder %s127, %s128
      %p142 = scmp.eq.s32.totalorder %s19, 3
      %p143 = por %p141, %p142
      %p145 = scmp.ne.s32.totalorder %s128, %s144
      %p146 = scmp.eq.s32.totalorder %s19, 0
      %p147 = por %p145, %p146
      %s148 = ssub.s32 %s20, %s39
      %p149 = scmp.eq.s32.totalorder %s148, 0
      %s151 = sadd.s32 %s150, 1
      %s152 = scalar_select %p149, %s150, %s151
      %p155 = pneg %p149
      %p156 = scmp.eq.s32.totalorder %s13, 3
      %p157 = por %p155, %p156
      %p158 = scmp.ne.s32.totalorder %s150, %s153
      %p159 = scmp.eq.s32.totalorder %s13, 0
      %p160 = por %p158, %p159
      %p161 = scmp.ne.s32.totalorder %s150, %s153
      %p162 = scmp.eq.s32.totalorder %s18, 3
      %p163 = por %p161, %p162
      %p164 = scmp.ne.s32.totalorder %s153, %s154
      %p165 = scmp.eq.s32.totalorder %s18, 0
      %p166 = por %p164, %p165
      %p167 = scmp.ne.s32.totalorder %s153, %s154
      %p168 = scmp.eq.s32.totalorder %s19, 3
      %p169 = por %p167, %p168
      %p171 = scmp.ne.s32.totalorder %s154, %s170
      %p172 = scmp.eq.s32.totalorder %s19, 0
      %p173 = por %p171, %p172
      %p174 = scmp.le.s32.totalorder 1, %s13
      %p175 = scmp.lt.s32.totalorder %s13, 5
      %p176 = pnand %p174, %p175
      %p177 = pneg %p176
      // Predicated region
      $region9: #{_sa_stats_batched.1} parent=5 // pred_check
        _
      $region10: #{_sa_stats_batched.1} parent=5 // pred_check_branch
        %179 = sbr.rel (%p176) target = $region12
      $region11: #{_sa_stats_batched.1} parent=5 // pred_region
        %s180 = ssub.s32 %s13, 1
      $region12: #{_sa_stats_batched.1} parent=5 // pred_fallthru
        _
      %p181 = scmp.lt.s32.totalorder %s13, 4
      // Predicated region
      $region13: #{_sa_stats_batched.1} parent=5 // pred_check
        %p182 = pneg %p181
      $region14: #{_sa_stats_batched.1} parent=5 // pred_check_branch
        %184 = sbr.rel (%p182) target = $region16
      $region15: #{_sa_stats_batched.1} parent=5 // pred_region
        // Predicated region
        $region17: #{_sa_stats_batched.1} parent=15 // pred_check
          %p185 = pneg %p54
        $region18: #{_sa_stats_batched.1} parent=15 // pred_check_branch
          %187 = sbr.rel (%p185) target = $region20
        $region19: #{_sa_stats_batched.1} parent=15 // pred_region
          %s188 = smul.u32 2, %s22
          %p189 = scmp.lt.s32.totalorder %s20, 1
          %s190 = scalar_select %p189, %s20, 1
          %p191 = scmp.lt.s32.totalorder %s188, 1
          %s192 = scalar_select %p191, %s188, 1
          %s193 = smul.addr %s190, 2
          %s194 = sadd.s32 %s192, %s193
          %s195 = smul.addr %s194, 4
          %s196 = scalar_lea.vmem %s0, %s195
          %s197 = smul.u32 2, %s22
        $region20: #{_sa_stats_batched.1} parent=15 // pred_fallthru
          _
        // Predicated region
        $region21: #{_sa_stats_batched.1} parent=15 // pred_check
          %p198 = pneg %p82
        $region22: #{_sa_stats_batched.1} parent=15 // pred_check_branch
          %200 = sbr.rel (%p198) target = $region24
        $region23: #{_sa_stats_batched.1} parent=15 // pred_region
          %s201 = smul.u32 2, %s22
          %p202 = scmp.lt.s32.totalorder %s20, 1
          %s203 = scalar_select %p202, %s20, 1
          %p204 = scmp.lt.s32.totalorder %s201, 1
          %s205 = scalar_select %p204, %s201, 1
          %s206 = smul.addr %s203, 2
          %s207 = sadd.s32 %s205, %s206
          %s208 = scalar_lea.vmem %s1, %s207
          %s209 = smul.u32 2, %s22
        $region24: #{_sa_stats_batched.1} parent=15 // pred_fallthru
          _
        // Predicated region
        $region25: #{_sa_stats_batched.1} parent=15 // pred_check
          %p210 = pneg %p108
        $region26: #{_sa_stats_batched.1} parent=15 // pred_check_branch
          %212 = sbr.rel (%p210) target = $region28
        $region27: #{_sa_stats_batched.1} parent=15 // pred_region
          %p213 = scmp.lt.s32.totalorder %s20, 1
          %s214 = scalar_select %p213, %s20, 1
          %s215 = smul.addr %s214, 8
          %s216 = scalar_lea.vmem %s2, %s215
        $region28: #{_sa_stats_batched.1} parent=15 // pred_fallthru
          _
        // Predicated region
        $region29: #{_sa_stats_batched.1} parent=15 // pred_check
          %p217 = pneg %p134
        $region30: #{_sa_stats_batched.1} parent=15 // pred_check_branch
          %219 = sbr.rel (%p217) target = $region32
        $region31: #{_sa_stats_batched.1} parent=15 // pred_region
          %p220 = scmp.lt.s32.totalorder %s20, 1
          %s221 = scalar_select %p220, %s20, 1
          %s222 = scalar_lea.vmem %s3, %s221
        $region32: #{_sa_stats_batched.1} parent=15 // pred_fallthru
          _
      $region16: #{_sa_stats_batched.1} parent=5 // pred_fallthru
        _
      %p223 = scmp.le.s32.totalorder 1, %s13
      %p224 = scmp.lt.s32.totalorder %s13, 5
      %p225 = pnand %p223, %p224
      %p226 = pneg %p225
      // Predicated region
      $region33: #{_sa_stats_batched.1} parent=5 // pred_check
        _
      $region34: #{_sa_stats_batched.1} parent=5 // pred_check_branch
        %228 = sbr.rel (%p225) target = $region36
      $region35: #{_sa_stats_batched.1} parent=5 // pred_region
        %s229 = ssub.s32 %s13, 1
        %s230 = smul.u32 2, %s25
        %p231 = scmp.lt.s32.totalorder %s23, 1
        %s232 = scalar_select %p231, %s23, 1
        %p233 = scmp.lt.s32.totalorder %s230, 1
        %s234 = scalar_select %p233, %s230, 1
        %s235 = smul.addr %s232, 2
        %s236 = sadd.s32 %s234, %s235
        %s237 = smul.addr %s236, 4
        %s238 = scalar_lea.vmem %s0, %s237
        %p239 = pneg %p60
        %p240 = pneg %p57
        %s241 = smul.u32 2, %s25
        %p242 = scmp.lt.s32.totalorder %s23, 1
        %s243 = scalar_select %p242, %s23, 1
        %p244 = scmp.lt.s32.totalorder %s241, 1
        %s245 = scalar_select %p244, %s241, 1
        %s246 = smul.addr %s243, 2
        %s247 = sadd.s32 %s245, %s246
        %s248 = scalar_lea.vmem %s1, %s247
        %p249 = pneg %p88
        %p250 = pneg %p85
        %p251 = scmp.lt.s32.totalorder %s23, 1
        %s252 = scalar_select %p251, %s23, 1
        %s253 = smul.addr %s252, 8
        %s254 = scalar_lea.vmem %s2, %s253
        %p255 = pneg %p114
        %p256 = pneg %p111
        %p257 = scmp.lt.s32.totalorder %s23, 1
        %s258 = scalar_select %p257, %s23, 1
        %s259 = scalar_lea.vmem %s3, %s258
        %p260 = pneg %p140
        %p261 = pneg %p137
        %p262 = pneg %p166
        %p263 = pneg %p163
        %s264 = sand.u32 %s153, 1
        %s265 = scalar_lea.sflag [#allocation5], %s264
        %s266 = sand.u32 %s153, 1
        %s267 = smul.addr %s266, 8
        %s268 = scalar_lea.vmem [#allocation4], %s267
        %s269 = smul.u32 2, %s25
        %p270 = scmp.lt.s32.totalorder %s23, 1
        %s271 = scalar_select %p270, %s23, 1
        %p272 = scmp.lt.s32.totalorder %s269, 1
        %s273 = scalar_select %p272, %s269, 1
        %s274 = smul.addr %s271, 2
        %s275 = sadd.s32 %s273, %s274
        %s276 = smul.addr %s275, 4
        %s277 = scalar_lea.vmem %s0, %s276
        %s278 = smul.u32 2, %s25
        %s279 = smul.u32 2, %s25
        %p280 = scmp.lt.s32.totalorder %s23, 1
        %s281 = scalar_select %p280, %s23, 1
        %p282 = scmp.lt.s32.totalorder %s279, 1
        %s283 = scalar_select %p282, %s279, 1
        %s284 = smul.addr %s281, 2
        %s285 = sadd.s32 %s283, %s284
        %s286 = scalar_lea.vmem %s1, %s285
        %s287 = smul.u32 2, %s25
        %p288 = scmp.lt.s32.totalorder %s23, 1
        %s289 = scalar_select %p288, %s23, 1
        %s290 = smul.addr %s289, 8
        %s291 = scalar_lea.vmem %s2, %s290
        %p292 = scmp.lt.s32.totalorder %s23, 1
        %s293 = scalar_select %p292, %s23, 1
        %s294 = scalar_lea.vmem %s3, %s293
        %v295 = vld [vmem:[%s291] sm:$0xff]
        %v296 = vld [vmem:[%s286] sm:$0x3]
        %v297 = vld [vmem:[%s277] sm:$0xff]
        %p298 = scmp.eq.s32.totalorder %s24, 0
        // Predicated region
        $region37: #{_sa_stats_batched.1} parent=35 // pred_check
          %p299 = pneg %p298
        $region38: #{_sa_stats_batched.1} parent=35 // pred_check_branch
          %301 = sbr.rel (%p299) target = $region40
        $region39: #{_sa_stats_batched.1} parent=35 // pred_region
          %p302 = scmp.eq.s32.totalorder %s25, 0
          // Predicated region
          $region41: #{_sa_stats_batched.1} parent=39 // pred_check
            %p303 = pneg %p302
          $region42: #{_sa_stats_batched.1} parent=39 // pred_check_branch
            %305 = sbr.rel (%p303) target = $region44
          $region43: #{_sa_stats_batched.1} parent=39 // pred_region
            %vm306 = vcmask 61440
            %307 = vst.msk [vmem:[#allocation2] sm:$0x1f] %vm306, 0.0
          $region44: #{_sa_stats_batched.1} parent=39 // pred_fallthru
            _
          %v308 = vshra.s32 %v296, 16
          %309 = vset.pattern.permute.xlu0 0
          %310 = vperm.xlu0 %309, %v295
          %v311 = vpop.permute.xlu0 %310
          %v312 = vlaneseq
          %v313 = vshrl.u32 %v312, 7
          %v314 = vsub.s32 0, %v313
          %v315 = vrot.slane %v308, %v314
          %v316 = vlaneseq
          %v317 = vshrl.u32 %v316, 7
          %v318 = vsub.s32 1, %v317
          %v319 = vrot.slane %v308, %v318
          %vm320 = vcmp.eq.s32.totalorder %v311, %v315
          %vm321 = vcmp.eq.s32.totalorder %v311, %v319
          %v322 = vsel %vm320, 1, 0
          %v323 = vsel %vm321, 1, 0
          %v324 = vcvt.s32.f32 %v322
          %v325 = vcvt.s32.f32 %v323
          %v326 = vld [vmem:[#allocation2] sm:$0xf]
          %v328 = vcombine.high %v297, %v297
          %330 = vmatprep.subr.mxu0 %v325
          %331 = vmatpush1.xpose.msra.mxu0 %v324
          %332 = vmatprep.subr.mxu0 0.0
          %333 = vmatpush1.xpose.msra.mxu0 0.0
          %334 = vmatprep.subr.mxu0 0.0
          %335 = vmatpush1.xpose.msra.mxu0 0.0
          %336 = vmatprep.subr.mxu0 0.0
          %337 = vmatpush1.xpose.msra.mxu0 0.0
          %338 = vmatprep.subr.mxu0 0.0
          %339 = vmatpush1.xpose.msra.mxu0 0.0
          %340 = vmatprep.subr.mxu0 0.0
          %341 = vmatpush1.xpose.msra.mxu0 0.0
          %342 = vmatprep.subr.mxu0 0.0
          %343 = vmatpush1.xpose.msra.mxu0 0.0
          %344 = vmatprep.subr.mxu0 0.0
          %345 = vmatpush1.xpose.msra.mxu0 0.0
          %346 = vmatprep.subr.mxu0 0.0
          %347 = vmatpush1.xpose.msra.mxu0 0.0
          %348 = vmatprep.subr.mxu0 0.0
          %349 = vmatpush1.xpose.msra.mxu0 0.0
          %350 = vmatprep.subr.mxu0 0.0
          %351 = vmatpush1.xpose.msra.mxu0 0.0
          %352 = vmatprep.subr.mxu0 0.0
          %353 = vmatpush1.xpose.msra.mxu0 0.0
          %354 = vmatprep.subr.mxu0 0.0
          %355 = vmatpush1.xpose.msra.mxu0 0.0
          %356 = vmatprep.subr.mxu0 0.0
          %357 = vmatpush1.xpose.msra.mxu0 0.0
          %358 = vmatprep.subr.mxu0 0.0
          %359 = vmatpush1.xpose.msra.mxu0 0.0
          %360 = vmatprep.subr.mxu0 0.0
          %361 = vmatpush1.xpose.msra.mxu0 0.0
          %362 = vmatprep.subr.mxu0 0.0
          %363 = vmatpush1.xpose.msra.mxu0 0.0
          %364 = vmatprep.subr.mxu0 0.0
          %365 = vmatpush1.xpose.msra.mxu0 0.0
          %366 = vmatprep.subr.mxu0 0.0
          %367 = vmatpush1.xpose.msra.mxu0 0.0
          %368 = vmatprep.subr.mxu0 0.0
          %369 = vmatpush1.xpose.msra.mxu0 0.0
          %370 = vmatprep.subr.mxu0 0.0
          %371 = vmatpush1.xpose.msra.mxu0 0.0
          %372 = vmatprep.subr.mxu0 0.0
          %373 = vmatpush1.xpose.msra.mxu0 0.0
          %374 = vmatprep.subr.mxu0 0.0
          %375 = vmatpush1.xpose.msra.mxu0 0.0
          %376 = vmatprep.subr.mxu0 0.0
          %377 = vmatpush1.xpose.msra.mxu0 0.0
          %378 = vmatprep.subr.mxu0 0.0
          %379 = vmatpush1.xpose.msra.mxu0 0.0
          %380 = vmatprep.subr.mxu0 0.0
          %381 = vmatpush1.xpose.msra.mxu0 0.0
          %382 = vmatprep.subr.mxu0 0.0
          %383 = vmatpush1.xpose.msra.mxu0 0.0
          %384 = vmatprep.subr.mxu0 0.0
          %385 = vmatpush1.xpose.msra.mxu0 0.0
          %386 = vmatprep.subr.mxu0 0.0
          %387 = vmatpush1.xpose.msra.mxu0 0.0
          %388 = vmatprep.subr.mxu0 0.0
          %389 = vmatpush1.xpose.msra.mxu0 0.0
          %390 = vmatprep.subr.mxu0 0.0
          %391 = vmatpush1.xpose.msra.mxu0 0.0
          %392 = vmatprep.subr.mxu0 0.0
          %393 = vmatpush1.xpose.msra.mxu0 0.0
          %394 = vmatprep.mubr.f32.mxu0 %v328
          %395 = vmatmul.mubr.f32.gmra.mrb[0].mxu0 %v297
          %v396 = vpop.f32.mrb[0].mxu0
          %v397 = vadd.f32 0.0, %v396
          %v398 = vpop.f32.mrb[0].mxu0
          %399 = vdwg.mxu0
          %v400 = vadd.f32 %v326, %v397
          %vm401 = vcmask 60416
          %402 = vst.msk [vmem:[#allocation2] sm:$0xf] %vm401, %v400
          %v403 = vld [vmem:[#allocation2 + $0x4] sm:$0x1]
          %404 = vmatprep.subr.mxu0 %v325
          %405 = vmatpush1.xpose.msra.mxu0 %v324
          %406 = vmatprep.subr.mxu0 0.0
          %407 = vmatpush1.xpose.msra.mxu0 0.0
          %408 = vmatprep.subr.mxu0 0.0
          %409 = vmatpush1.xpose.msra.mxu0 0.0
          %410 = vmatprep.subr.mxu0 0.0
          %411 = vmatpush1.xpose.msra.mxu0 0.0
          %412 = vmatprep.subr.mxu0 0.0
          %413 = vmatpush1.xpose.msra.mxu0 0.0
          %414 = vmatprep.subr.mxu0 0.0
          %415 = vmatpush1.xpose.msra.mxu0 0.0
          %416 = vmatprep.subr.mxu0 0.0
          %417 = vmatpush1.xpose.msra.mxu0 0.0
          %418 = vmatprep.subr.mxu0 0.0
          %419 = vmatpush1.xpose.msra.mxu0 0.0
          %420 = vmatprep.subr.mxu0 0.0
          %421 = vmatpush1.xpose.msra.mxu0 0.0
          %422 = vmatprep.subr.mxu0 0.0
          %423 = vmatpush1.xpose.msra.mxu0 0.0
          %424 = vmatprep.subr.mxu0 0.0
          %425 = vmatpush1.xpose.msra.mxu0 0.0
          %426 = vmatprep.subr.mxu0 0.0
          %427 = vmatpush1.xpose.msra.mxu0 0.0
          %428 = vmatprep.subr.mxu0 0.0
          %429 = vmatpush1.xpose.msra.mxu0 0.0
          %430 = vmatprep.subr.mxu0 0.0
          %431 = vmatpush1.xpose.msra.mxu0 0.0
          %432 = vmatprep.subr.mxu0 0.0
          %433 = vmatpush1.xpose.msra.mxu0 0.0
          %434 = vmatprep.subr.mxu0 0.0
          %435 = vmatpush1.xpose.msra.mxu0 0.0
          %436 = vmatprep.subr.mxu0 0.0
          %437 = vmatpush1.xpose.msra.mxu0 0.0
          %438 = vmatprep.subr.mxu0 0.0
          %439 = vmatpush1.xpose.msra.mxu0 0.0
          %440 = vmatprep.subr.mxu0 0.0
          %441 = vmatpush1.xpose.msra.mxu0 0.0
          %442 = vmatprep.subr.mxu0 0.0
          %443 = vmatpush1.xpose.msra.mxu0 0.0
          %444 = vmatprep.subr.mxu0 0.0
          %445 = vmatpush1.xpose.msra.mxu0 0.0
          %446 = vmatprep.subr.mxu0 0.0
          %447 = vmatpush1.xpose.msra.mxu0 0.0
          %448 = vmatprep.subr.mxu0 0.0
          %449 = vmatpush1.xpose.msra.mxu0 0.0
          %450 = vmatprep.subr.mxu0 0.0
          %451 = vmatpush1.xpose.msra.mxu0 0.0
          %452 = vmatprep.subr.mxu0 0.0
          %453 = vmatpush1.xpose.msra.mxu0 0.0
          %454 = vmatprep.subr.mxu0 0.0
          %455 = vmatpush1.xpose.msra.mxu0 0.0
          %456 = vmatprep.subr.mxu0 0.0
          %457 = vmatpush1.xpose.msra.mxu0 0.0
          %458 = vmatprep.subr.mxu0 0.0
          %459 = vmatpush1.xpose.msra.mxu0 0.0
          %460 = vmatprep.subr.mxu0 0.0
          %461 = vmatpush1.xpose.msra.mxu0 0.0
          %462 = vmatprep.subr.mxu0 0.0
          %463 = vmatpush1.xpose.msra.mxu0 0.0
          %464 = vmatprep.subr.mxu0 0.0
          %465 = vmatpush1.xpose.msra.mxu0 0.0
          %466 = vmatprep.subr.mxu0 0.0
          %467 = vmatpush1.xpose.msra.mxu0 0.0
          %468 = vmatprep.mubr.f32.mxu0 1.0
          %469 = vmatmul.mubr.f32.gmra.mrb[0].mxu0 1.0
          %v470 = vpop.f32.mrb[0].mxu0
          %v471 = vadd.f32 0.0, %v470
          %v472 = vpop.f32.mrb[0].mxu0
          %473 = vdwg.mxu0
          %v474 = vadd.f32 %v403, %v471
          %vm475 = vcmask 57344
          %476 = vst.msk [vmem:[#allocation2 + $0x4] sm:$0x1] %vm475, %v474
          // Predicated region
          $region45: #{_sa_stats_batched.1} parent=39 // pred_check
            %p477 = pneg %p302
          $region46: #{_sa_stats_batched.1} parent=39 // pred_check_branch
            %479 = sbr.rel (%p477) target = $region48
          $region47: #{_sa_stats_batched.1} parent=39 // pred_region
            %v480 = vld [vmem:[#allocation2] sm:$0xf]
            %v481 = vld [vmem:[#allocation2 + $0x4] sm:$0x1]
            %v482 = vmax.f32 %v481, 1.0
            %v483 = vlaneseq
            %v484 = vshrl.u32 %v483, 7
            %v485 = vsub.s32 0, %v484
            %v486 = vrot.slane %v482, %v485
            %v487 = vrcp.pop %v486
            %v488 = vmul.f32 %v480, %v487
            %489 = vst.msk [vmem:[#allocation2] sm:$0xf] %vm401, %v488
            %v490 = vld [vmem:[%s294] sm:$0x1]
            %491 = vst.msk [vmem:[#allocation2 + $0x4] sm:$0x1] %vm475, %v490
          $region48: #{_sa_stats_batched.1} parent=39 // pred_fallthru
            _
        $region40: #{_sa_stats_batched.1} parent=35 // pred_fallthru
          _
        %p492 = scmp.eq.s32.totalorder %s24, 1
        // Predicated region
        $region49: #{_sa_stats_batched.1} parent=35 // pred_check
          %p493 = pneg %p492
        $region50: #{_sa_stats_batched.1} parent=35 // pred_check_branch
          %495 = sbr.rel (%p493) target = $region52
        $region51: #{_sa_stats_batched.1} parent=35 // pred_region
          %p496 = scmp.eq.s32.totalorder %s25, 0
          // Predicated region
          $region53: #{_sa_stats_batched.1} parent=51 // pred_check
            %p497 = pneg %p496
          $region54: #{_sa_stats_batched.1} parent=51 // pred_check_branch
            %499 = sbr.rel (%p497) target = $region56
          $region55: #{_sa_stats_batched.1} parent=51 // pred_region
            %vm500 = vcmask 58368
            %501 = vst.msk [vmem:[#allocation3] sm:$0x3] %vm500, 0.0
          $region56: #{_sa_stats_batched.1} parent=51 // pred_fallthru
            _
          %v502 = vand.u32 %v296, 65535
          %503 = vset.pattern.permute.xlu0 0
          %504 = vperm.xlu0 %503, %v295
          %v505 = vpop.permute.xlu0 %504
          %v506 = vlaneseq
          %v507 = vshrl.u32 %v506, 7
          %v508 = vsub.s32 0, %v507
          %v509 = vrot.slane %v502, %v508
          %v510 = vlaneseq
          %v511 = vshrl.u32 %v510, 7
          %v512 = vsub.s32 1, %v511
          %v513 = vrot.slane %v502, %v512
          %vm514 = vcmp.eq.s32.totalorder %v505, %v509
          %vm515 = vcmp.eq.s32.totalorder %v505, %v513
          %v516 = vsel %vm514, 1, 0
          %v517 = vsel %vm515, 1, 0
          %v518 = vcvt.s32.f32 %v516
          %v519 = vcvt.s32.f32 %v517
          %v520 = vld [vmem:[#allocation2] sm:$0x1f]
          %vm521 = vcmask 64512
          %v523 = vsel %vm521, %v520, 0
          %525 = vmatprep.subr.mxu0 %v519
          %526 = vmatpush1.msra.mxu0 %v518
          %527 = vmatprep.subr.mxu0 0.0
          %528 = vmatpush1.msra.mxu0 0.0
          %529 = vmatprep.subr.mxu0 0.0
          %530 = vmatpush1.msra.mxu0 0.0
          %531 = vmatprep.subr.mxu0 0.0
          %532 = vmatpush1.msra.mxu0 0.0
          %533 = vmatprep.subr.mxu0 0.0
          %534 = vmatpush1.msra.mxu0 0.0
          %535 = vmatprep.subr.mxu0 0.0
          %536 = vmatpush1.msra.mxu0 0.0
          %537 = vmatprep.subr.mxu0 0.0
          %538 = vmatpush1.msra.mxu0 0.0
          %539 = vmatprep.subr.mxu0 0.0
          %540 = vmatpush1.msra.mxu0 0.0
          %541 = vmatprep.subr.mxu0 0.0
          %542 = vmatpush1.msra.mxu0 0.0
          %543 = vmatprep.subr.mxu0 0.0
          %544 = vmatpush1.msra.mxu0 0.0
          %545 = vmatprep.subr.mxu0 0.0
          %546 = vmatpush1.msra.mxu0 0.0
          %547 = vmatprep.subr.mxu0 0.0
          %548 = vmatpush1.msra.mxu0 0.0
          %549 = vmatprep.subr.mxu0 0.0
          %550 = vmatpush1.msra.mxu0 0.0
          %551 = vmatprep.subr.mxu0 0.0
          %552 = vmatpush1.msra.mxu0 0.0
          %553 = vmatprep.subr.mxu0 0.0
          %554 = vmatpush1.msra.mxu0 0.0
          %555 = vmatprep.subr.mxu0 0.0
          %556 = vmatpush1.msra.mxu0 0.0
          %557 = vmatprep.subr.mxu0 0.0
          %558 = vmatpush1.msra.mxu0 0.0
          %559 = vmatprep.subr.mxu0 0.0
          %560 = vmatpush1.msra.mxu0 0.0
          %561 = vmatprep.subr.mxu0 0.0
          %562 = vmatpush1.msra.mxu0 0.0
          %563 = vmatprep.subr.mxu0 0.0
          %564 = vmatpush1.msra.mxu0 0.0
          %565 = vmatprep.subr.mxu0 0.0
          %566 = vmatpush1.msra.mxu0 0.0
          %567 = vmatprep.subr.mxu0 0.0
          %568 = vmatpush1.msra.mxu0 0.0
          %569 = vmatprep.subr.mxu0 0.0
          %570 = vmatpush1.msra.mxu0 0.0
          %571 = vmatprep.subr.mxu0 0.0
          %572 = vmatpush1.msra.mxu0 0.0
          %573 = vmatprep.subr.mxu0 0.0
          %574 = vmatpush1.msra.mxu0 0.0
          %575 = vmatprep.subr.mxu0 0.0
          %576 = vmatpush1.msra.mxu0 0.0
          %577 = vmatprep.subr.mxu0 0.0
          %578 = vmatpush1.msra.mxu0 0.0
          %579 = vmatprep.subr.mxu0 0.0
          %580 = vmatpush1.msra.mxu0 0.0
          %581 = vmatprep.subr.mxu0 0.0
          %582 = vmatpush1.msra.mxu0 0.0
          %583 = vmatprep.subr.mxu0 0.0
          %584 = vmatpush1.msra.mxu0 0.0
          %585 = vmatprep.subr.mxu0 0.0
          %586 = vmatpush1.msra.mxu0 0.0
          %587 = vmatprep.subr.mxu0 0.0
          %588 = vmatpush1.msra.mxu0 0.0
          %589 = vmatprep.mubr.f32.mxu0 0.0
          %590 = vmatmul.mubr.f32.gmra.mrb[0].mxu0 %v523
          %v591 = vpop.f32.mrb[0].mxu0
          %v592 = vadd.f32 0.0, %v591
          %v593 = vpop.f32.mrb[0].mxu0
          %v594 = vadd.f32 0.0, %v593
          %595 = vdwg.mxu0
          %v598 = vcombine.low %v592, %v594
          %v600 = vsub.f32 %v297, %v598
          %v601 = vmul.f32 %v600, %v600
          %v603 = vcombine.high %v601, %v601
          %vm605 = vcmask 1043456
          %v606 = vsel %vm605, %v601, 0.0
          %v607 = vrot.slane %v606, 4
          %v608 = vadd.f32 %v606, %v607
          %v609 = vrot.slane %v608, 2
          %v610 = vadd.f32 %v608, %v609
          %v611 = vrot.slane %v610, 1
          %v612 = vadd.f32 %v610, %v611
          %v613 = vsel %vm605, %v603, 0.0
          %v614 = vrot.slane %v613, 4
          %v615 = vadd.f32 %v613, %v614
          %v616 = vrot.slane %v615, 2
          %v617 = vadd.f32 %v615, %v616
          %v618 = vrot.slane %v617, 1
          %v619 = vadd.f32 %v617, %v618
          %v620 = vrsqrt.pop %v612
          %v621 = vmul.f32 %v612, %v620
          %vm622 = vcmp.eq.f32.partialorder %v612, inf
          %v623 = vsel %vm622, %v612, %v621
          %vm624 = vcmp.eq.f32.partialorder %v612, 0.0
          %v625 = vand.u32 %v612, 2147483648
          %v626 = vsel %vm624, %v625, %v623
          %v627 = vrsqrt.pop %v619
          %v628 = vmul.f32 %v619, %v627
          %vm629 = vcmp.eq.f32.partialorder %v619, inf
          %v630 = vsel %vm629, %v619, %v628
          %vm631 = vcmp.eq.f32.partialorder %v619, 0.0
          %v632 = vand.u32 %v619, 2147483648
          %v633 = vsel %vm631, %v632, %v630
          %v634 = vmul.f32 %v592, %v626
          %v635 = vmul.f32 %v594, %v633
          %v636 = vsub.f32 %v634, 0.5
          %v637 = vsub.f32 %v635, 0.5
          %v638 = vmax.f32 %v636, 0.0
          %v639 = vmax.f32 %v637, 0.0
          %v640 = vmul.f32 %v638, %v638
          %v641 = vmul.f32 %v639, %v639
          %v642 = vadd.f32 %v640, 1.0
          %v643 = vadd.f32 %v641, 1.0
          %v644 = vlog2.pop %v642
          %v645 = vmul.f32 %v644, 0.6931472
          %v646 = vlog2.pop %v643
          %v647 = vmul.f32 %v646, 0.6931472
          %v648 = vld [vmem:[#allocation3] sm:$0x1]
          %v651 = vrot.slane %v645, 4
          %v652 = vrot.slane %v647, 4
          %655 = vmatprep.subr.mxu0 %v519
          %656 = vmatpush1.xpose.msra.mxu0 %v518
          %657 = vmatprep.subr.mxu0 0.0
          %658 = vmatpush1.xpose.msra.mxu0 0.0
          %659 = vmatprep.subr.mxu0 0.0
          %660 = vmatpush1.xpose.msra.mxu0 0.0
          %661 = vmatprep.subr.mxu0 0.0
          %662 = vmatpush1.xpose.msra.mxu0 0.0
          %663 = vmatprep.subr.mxu0 0.0
          %664 = vmatpush1.xpose.msra.mxu0 0.0
          %665 = vmatprep.subr.mxu0 0.0
          %666 = vmatpush1.xpose.msra.mxu0 0.0
          %667 = vmatprep.subr.mxu0 0.0
          %668 = vmatpush1.xpose.msra.mxu0 0.0
          %669 = vmatprep.subr.mxu0 0.0
          %670 = vmatpush1.xpose.msra.mxu0 0.0
          %671 = vmatprep.subr.mxu0 0.0
          %672 = vmatpush1.xpose.msra.mxu0 0.0
          %673 = vmatprep.subr.mxu0 0.0
          %674 = vmatpush1.xpose.msra.mxu0 0.0
          %675 = vmatprep.subr.mxu0 0.0
          %676 = vmatpush1.xpose.msra.mxu0 0.0
          %677 = vmatprep.subr.mxu0 0.0
          %678 = vmatpush1.xpose.msra.mxu0 0.0
          %679 = vmatprep.subr.mxu0 0.0
          %680 = vmatpush1.xpose.msra.mxu0 0.0
          %681 = vmatprep.subr.mxu0 0.0
          %682 = vmatpush1.xpose.msra.mxu0 0.0
          %683 = vmatprep.subr.mxu0 0.0
          %684 = vmatpush1.xpose.msra.mxu0 0.0
          %685 = vmatprep.subr.mxu0 0.0
          %686 = vmatpush1.xpose.msra.mxu0 0.0
          %687 = vmatprep.subr.mxu0 0.0
          %688 = vmatpush1.xpose.msra.mxu0 0.0
          %689 = vmatprep.subr.mxu0 0.0
          %690 = vmatpush1.xpose.msra.mxu0 0.0
          %691 = vmatprep.subr.mxu0 0.0
          %692 = vmatpush1.xpose.msra.mxu0 0.0
          %693 = vmatprep.subr.mxu0 0.0
          %694 = vmatpush1.xpose.msra.mxu0 0.0
          %695 = vmatprep.subr.mxu0 0.0
          %696 = vmatpush1.xpose.msra.mxu0 0.0
          %697 = vmatprep.subr.mxu0 0.0
          %698 = vmatpush1.xpose.msra.mxu0 0.0
          %699 = vmatprep.subr.mxu0 0.0
          %700 = vmatpush1.xpose.msra.mxu0 0.0
          %701 = vmatprep.subr.mxu0 0.0
          %702 = vmatpush1.xpose.msra.mxu0 0.0
          %703 = vmatprep.subr.mxu0 0.0
          %704 = vmatpush1.xpose.msra.mxu0 0.0
          %705 = vmatprep.subr.mxu0 0.0
          %706 = vmatpush1.xpose.msra.mxu0 0.0
          %707 = vmatprep.subr.mxu0 0.0
          %708 = vmatpush1.xpose.msra.mxu0 0.0
          %709 = vmatprep.subr.mxu0 0.0
          %710 = vmatpush1.xpose.msra.mxu0 0.0
          %711 = vmatprep.subr.mxu0 0.0
          %712 = vmatpush1.xpose.msra.mxu0 0.0
          %713 = vmatprep.subr.mxu0 0.0
          %714 = vmatpush1.xpose.msra.mxu0 0.0
          %715 = vmatprep.subr.mxu0 0.0
          %716 = vmatpush1.xpose.msra.mxu0 0.0
          %717 = vmatprep.subr.mxu0 0.0
          %718 = vmatpush1.xpose.msra.mxu0 0.0
          %719 = vmatprep.mubr.f32.mxu0 %v652
          %720 = vmatmul.mubr.f32.gmra.mrb[0].mxu0 %v651
          %v721 = vpop.f32.mrb[0].mxu0
          %v722 = vadd.f32 0.0, %v721
          %v723 = vpop.f32.mrb[0].mxu0
          %724 = vdwg.mxu0
          %v725 = vadd.f32 %v648, %v722
          %vm726 = vcmask 57344
          %727 = vst.msk [vmem:[#allocation3] sm:$0x1] %vm726, %v725
          %v728 = vld [vmem:[#allocation3 + $0x1] sm:$0x1]
          %729 = vmatprep.subr.mxu0 %v519
          %730 = vmatpush1.xpose.msra.mxu0 %v518
          %731 = vmatprep.subr.mxu0 0.0
          %732 = vmatpush1.xpose.msra.mxu0 0.0
          %733 = vmatprep.subr.mxu0 0.0
          %734 = vmatpush1.xpose.msra.mxu0 0.0
          %735 = vmatprep.subr.mxu0 0.0
          %736 = vmatpush1.xpose.msra.mxu0 0.0
          %737 = vmatprep.subr.mxu0 0.0
          %738 = vmatpush1.xpose.msra.mxu0 0.0
          %739 = vmatprep.subr.mxu0 0.0
          %740 = vmatpush1.xpose.msra.mxu0 0.0
          %741 = vmatprep.subr.mxu0 0.0
          %742 = vmatpush1.xpose.msra.mxu0 0.0
          %743 = vmatprep.subr.mxu0 0.0
          %744 = vmatpush1.xpose.msra.mxu0 0.0
          %745 = vmatprep.subr.mxu0 0.0
          %746 = vmatpush1.xpose.msra.mxu0 0.0
          %747 = vmatprep.subr.mxu0 0.0
          %748 = vmatpush1.xpose.msra.mxu0 0.0
          %749 = vmatprep.subr.mxu0 0.0
          %750 = vmatpush1.xpose.msra.mxu0 0.0
          %751 = vmatprep.subr.mxu0 0.0
          %752 = vmatpush1.xpose.msra.mxu0 0.0
          %753 = vmatprep.subr.mxu0 0.0
          %754 = vmatpush1.xpose.msra.mxu0 0.0
          %755 = vmatprep.subr.mxu0 0.0
          %756 = vmatpush1.xpose.msra.mxu0 0.0
          %757 = vmatprep.subr.mxu0 0.0
          %758 = vmatpush1.xpose.msra.mxu0 0.0
          %759 = vmatprep.subr.mxu0 0.0
          %760 = vmatpush1.xpose.msra.mxu0 0.0
          %761 = vmatprep.subr.mxu0 0.0
          %762 = vmatpush1.xpose.msra.mxu0 0.0
          %763 = vmatprep.subr.mxu0 0.0
          %764 = vmatpush1.xpose.msra.mxu0 0.0
          %765 = vmatprep.subr.mxu0 0.0
          %766 = vmatpush1.xpose.msra.mxu0 0.0
          %767 = vmatprep.subr.mxu0 0.0
          %768 = vmatpush1.xpose.msra.mxu0 0.0
          %769 = vmatprep.subr.mxu0 0.0
          %770 = vmatpush1.xpose.msra.mxu0 0.0
          %771 = vmatprep.subr.mxu0 0.0
          %772 = vmatpush1.xpose.msra.mxu0 0.0
          %773 = vmatprep.subr.mxu0 0.0
          %774 = vmatpush1.xpose.msra.mxu0 0.0
          %775 = vmatprep.subr.mxu0 0.0
          %776 = vmatpush1.xpose.msra.mxu0 0.0
          %777 = vmatprep.subr.mxu0 0.0
          %778 = vmatpush1.xpose.msra.mxu0 0.0
          %779 = vmatprep.subr.mxu0 0.0
          %780 = vmatpush1.xpose.msra.mxu0 0.0
          %781 = vmatprep.subr.mxu0 0.0
          %782 = vmatpush1.xpose.msra.mxu0 0.0
          %783 = vmatprep.subr.mxu0 0.0
          %784 = vmatpush1.xpose.msra.mxu0 0.0
          %785 = vmatprep.subr.mxu0 0.0
          %786 = vmatpush1.xpose.msra.mxu0 0.0
          %787 = vmatprep.subr.mxu0 0.0
          %788 = vmatpush1.xpose.msra.mxu0 0.0
          %789 = vmatprep.subr.mxu0 0.0
          %790 = vmatpush1.xpose.msra.mxu0 0.0
          %791 = vmatprep.subr.mxu0 0.0
          %792 = vmatpush1.xpose.msra.mxu0 0.0
          %793 = vmatprep.mubr.f32.mxu0 1.0
          %794 = vmatmul.mubr.f32.gmra.mrb[0].mxu0 1.0
          %v795 = vpop.f32.mrb[0].mxu0
          %v796 = vadd.f32 0.0, %v795
          %v797 = vpop.f32.mrb[0].mxu0
          %798 = vdwg.mxu0
          %v799 = vadd.f32 %v728, %v796
          %800 = vst.msk [vmem:[#allocation3 + $0x1] sm:$0x1] %vm726, %v799
          // Predicated region
          $region57: #{_sa_stats_batched.1} parent=51 // pred_check
            %p801 = pneg %p496
          $region58: #{_sa_stats_batched.1} parent=51 // pred_check_branch
            %803 = sbr.rel (%p801) target = $region60
          $region59: #{_sa_stats_batched.1} parent=51 // pred_region
            %804 = vst [vmem:[%s268] sm:$0xff] 0.0
            %v805 = vld [vmem:[#allocation2] sm:$0xf]
            %vm806 = vcmask 60416
            %807 = vst.msk [vmem:[%s268] sm:$0xf] %vm806, %v805
            %v808 = vld [vmem:[#allocation3] sm:$0x3]
            %vm809 = vcmask 58368
            %810 = vst.msk [vmem:[%s268 + $0x4] sm:$0x3] %vm809, %v808
          $region60: #{_sa_stats_batched.1} parent=51 // pred_fallthru
            _
        $region52: #{_sa_stats_batched.1} parent=35 // pred_fallthru
          _
        %s811 = sand.u32 %s153, 1
        %s812 = scalar_lea.sflag [#allocation5], %s811
        %s813 = sand.u32 %s153, 1
        %s814 = smul.addr %s813, 8
        %s815 = scalar_lea.vmem [#allocation4], %s814
        // Predicated region
        $region61: #{_sa_stats_batched.1} parent=35 // pred_check
          %p816 = pneg %p163
        $region62: #{_sa_stats_batched.1} parent=35 // pred_check_branch
          %818 = sbr.rel (%p816) target = $region64
        $region63: #{_sa_stats_batched.1} parent=35 // pred_region
          %s820 = ssub.s32 128, 128
          %821 = vsyncadd %s812, %s820
          %s822 = smul.addr %s23, 128
          %s823 = scalar_lea.hbm %s4, %s822
          %s825 = sshll.u32 %s815, 4
          %s826 = int_to_ptr.vmem [resolvable:$true] %s825
          %828 = dma.vmem_to_hbm [thread:$0]  %s826, 128, %s823, %s812
        $region64: #{_sa_stats_batched.1} parent=35 // pred_fallthru
          _
      $region36: #{_sa_stats_batched.1} parent=5 // pred_fallthru
        _
      %p829 = scmp.le.s32.totalorder 2, %s13
      // Predicated region
      $region65: #{_sa_stats_batched.1} parent=5 // pred_check
        %p830 = pneg %p829
      $region66: #{_sa_stats_batched.1} parent=5 // pred_check_branch
        %832 = sbr.rel (%p830) target = $region68
      $region67: #{_sa_stats_batched.1} parent=5 // pred_region
        %s833 = ssub.s32 %s13, 2
        // Predicated region
        $region69: #{_sa_stats_batched.1} parent=67 // pred_check
          %p834 = pneg %p169
        $region70: #{_sa_stats_batched.1} parent=67 // pred_check_branch
          %836 = sbr.rel (%p834) target = $region72
        $region71: #{_sa_stats_batched.1} parent=67 // pred_region
          %s837 = sand.u32 %s154, 1
          %s838 = scalar_lea.sflag [#allocation5], %s837
          %s839 = sand.u32 %s154, 1
          %s840 = smul.addr %s839, 8
          %s841 = scalar_lea.vmem [#allocation4], %s840
          %842 = dma.done %s838, 128
        $region72: #{_sa_stats_batched.1} parent=67 // pred_fallthru
          _
      $region68: #{_sa_stats_batched.1} parent=5 // pred_fallthru
        _
    $region6: #{_sa_stats_batched.1} parent=1 // loop_footer
      %s17 = sadd.s32 1, %s13
    $region7: #{_sa_stats_batched.1} parent=1 // loop_footer_branch
      %12 = sbr.rel target = $region3
    $region8: #{_sa_stats_batched.1} parent=1 // loop_exit
      _
    %843 = vsyncpa [#allocation5], 1
    %s844 = scalar_lea.sflag [#allocation5], 1
    %845 = vsyncpa %s844, 1

</llo_original>
